<compile_context>
chip_gen: v7x
topology: tpu7x:2x2x1
jax: 0.10.0
libtpu: 0.0.40
codegen_flags: <defaults>
</compile_context>

<pallas_src>
import functools

import jax
import jax.numpy as jnp
from jax.experimental import pallas as pl
from jax.experimental.pallas import tpu as pltpu

_MIB = 1024 * 1024
# Large-but-finite stand-in for -inf: keeps max/exp arithmetic NaN-free on
# fully-masked rows/tiles (exp(x - _NEG_BIG) never appears; exp(_NEG_BIG) == 0).
_NEG_BIG = -1e30


def _round_up(x, m):
    return ((x + m - 1) // m) * m


def _vmem_capacity_bytes():
    try:
        return int(pltpu.get_tpu_info().vmem_capacity_bytes)
    except Exception:
        return 64 * _MIB          # conservative (v7x per-TC VMEM)


def _choose_tiles(a_rows, n_total, d_pad, itemsize, budget):
    """Pick (ta, tn): anchor-row tile and contrast-column tile.

    ta is a multiple of 8 (multiple of 128 once large) so sublanes stay full;
    tn is a multiple of 128 so the (ta, tn) logits plane and the (1, tn)
    column-group-id block are lane-dense.  The contrast tile is shrunk before
    the anchor tile so the MXU row dimension stays as large as possible.
    """
    ta = min(512, _round_up(a_rows, 8))
    if ta > 128:
        ta = _round_up(ta, 128)
    tn = min(2048, _round_up(n_total, 128))

    def working_set(ta_, tn_):
        nk = pl.cdiv(n_total, tn_)
        c_buffers = 1 if nk == 1 else 2      # grid-invariant contrast: 1 buffer
        return (6 * ta_ * tn_ * 4            # (ta, tn) f32 working planes
                + 2 * ta_ * d_pad * itemsize           # double-buffered anchor
                + c_buffers * tn_ * d_pad * itemsize   # contrast tile(s)
                + 2 * (ta_ + tn_) * 4                  # group-id blocks
                + 6 * ta_ * 4)                         # accumulators + output

    while working_set(ta, tn) > budget and tn > 256:
        tn = max(256, _round_up(tn // 2, 128))
    while working_set(ta, tn) > budget and ta > 128:
        ta = max(128, _round_up(ta // 2, 128))
    while working_set(ta, tn) > budget and tn > 128:
        tn = max(128, _round_up(tn // 2, 128))

    # Guarantee >= 2 anchor tiles when there is enough work, so the
    # ("parallel",) axis actually spans both TensorCores on v7x.  On 1-TC
    # parts this only adds one ~0.35us grid step.
    while _round_up(a_rows, ta) // ta < 2 and a_rows >= 256 and ta > 128:
        ta = max(128, _round_up(ta // 2, 128))

    return ta, tn


def _supcon_kernel(anchor_ref, contrast_ref, row_gid_ref, col_gid_ref, loss_ref,
                   m_acc, s_acc, psum_acc, pcnt_acc, *,
                   inv_temp, loss_scale, num_valid_anchors, num_valid_cols):
    i = pl.program_id(0)          # anchor tile
    k = pl.program_id(1)          # contrast tile (reduction axis)

    @pl.when(k == 0)
    def _init():
        m_acc[...] = jnp.full_like(m_acc, _NEG_BIG)
        s_acc[...] = jnp.zeros_like(s_acc)
        psum_acc[...] = jnp.zeros_like(psum_acc)
        pcnt_acc[...] = jnp.zeros_like(pcnt_acc)

    # Fold 1/temperature into the small (TA, D) operand.  Scale in f32 and cast
    # back for the MXU (avoids bf16 VALU emulation on v5e, keeps the ~14.3
    # scale precise); accumulation is f32 via preferred_element_type.
    a = anchor_ref[...]
    if a.dtype == jnp.float32:
        a = a * inv_temp
    else:
        a = (a.astype(jnp.float32) * inv_temp).astype(a.dtype)

    # logits tile = (A / T) @ C^T, contracting the last dims directly.
    logits = jax.lax.dot_general(
        a, contrast_ref[...], dimension_numbers=(((1,), (1,)), ((), ())),
        preferred_element_type=jnp.float32)                 # (TA, TN) f32

    ta, tn = logits.shape
    row0 = i * ta
    rows = row0 + jax.lax.broadcasted_iota(jnp.int32, (ta, tn), 0)
    cols = k * tn + jax.lax.broadcasted_iota(jnp.int32, (ta, tn), 1)
    # denominator terms: every real contrast column except the anchor itself
    in_denom = jnp.logical_and(cols < num_valid_cols, rows != cols)

    # --- online logsumexp over the softmax denominator (no log_prob plane) ---
    masked = jnp.where(in_denom, logits, _NEG_BIG)
    m_new = jnp.maximum(m_acc[...], jnp.max(masked, axis=1, keepdims=True))
    exp_tile = jnp.where(in_denom, jnp.exp(masked - m_new), 0.0)
    s_acc[...] = (s_acc[...] * jnp.exp(m_acc[...] - m_new)
                  + jnp.sum(exp_tile, axis=1, keepdims=True))
    m_acc[...] = m_new

    # --- positive-pair numerator: mask rebuilt in-register from group ids ---
    pos = jnp.logical_and(row_gid_ref[...] == col_gid_ref[...], in_denom)
    psum_acc[...] += jnp.sum(jnp.where(pos, logits, 0.0), axis=1, keepdims=True)
    pcnt_acc[...] += jnp.sum(pos.astype(jnp.float32), axis=1, keepdims=True)

    @pl.when(k == pl.num_programs(1) - 1)
    def _emit():
        # mean_pos(logits) - logsumexp_{j!=i}(logits) == (mask*log_prob).sum/mask.sum
        lse = m_acc[...] + jnp.log(s_acc[...])
        # exact divide; anchors with zero positives give NaN exactly like the
        # reference PyTorch implementation.
        mean_log_prob_pos = psum_acc[...] / pcnt_acc[...] - lse
        per_anchor = loss_scale * mean_log_prob_pos
        # rows that only exist because A was padded to the tile size -> exact 0
        row_idx = row0 + jax.lax.broadcasted_iota(jnp.int32, (ta, 1), 0)
        loss_ref[...] = jnp.where(row_idx < num_valid_anchors, per_anchor, 0.0)


def supcon_loss(features, labels=None, mask=None, *, temperature=0.07,
                contrast_mode='all', base_temperature=0.07, matmul_dtype=None):
    """JAX/Pallas equivalent of SupConLoss.forward (labels / SimCLR paths).

    `matmul_dtype=jnp.bfloat16` optionally casts the MXU operands to bf16
    (f32 accumulation) for ~2x MXU throughput and half the VMEM/HBM traffic.
    """
    features = jnp.asarray(features)
    if features.ndim < 3:
        raise ValueError('`features` needs to be [bsz, n_views, ...]')
    if features.ndim > 3:
        features = features.reshape(features.shape[0], features.shape[1], -1)

    bsz, n_views = features.shape[0], features.shape[1]

    if labels is not None and mask is not None:
        raise ValueError('Cannot define both `labels` and `mask`')
    if mask is not None:
        # TODO(synk): an arbitrary (possibly asymmetric) user-supplied `mask`
        # cannot be expressed as group-id equality, so it is not routed through
        # the Pallas kernel.
        raise NotImplementedError('explicit `mask` argument is not supported')
    if labels is None:
        group = jnp.arange(bsz, dtype=jnp.int32)       # eye(bsz): SimCLR case
    else:
        labels = jnp.asarray(labels).reshape(-1)
        if labels.shape[0] != bsz:
            raise ValueError('Num of labels does not match num of features')
        group = labels.astype(jnp.int32)

    # torch.cat(torch.unbind(features, dim=1), dim=0): view-major stacking
    contrast_feature = jnp.concatenate(
        [features[:, v] for v in range(n_views)], axis=0)          # (N, D)
    n_total = bsz * n_views
    col_gid = jnp.tile(group, (n_views,))                          # (N,)

    if contrast_mode == 'one':
        anchor_feature = features[:, 0]
        anchor_count = 1
        row_gid = group
    elif contrast_mode == 'all':
        anchor_feature = contrast_feature
        anchor_count = n_views
        row_gid = col_gid
    else:
        raise ValueError(f'Unknown mode: {contrast_mode}')

    a_rows = bsz * anchor_count
    feat_dim = anchor_feature.shape[-1]

    if matmul_dtype is not None and anchor_feature.dtype != matmul_dtype:
        anchor_feature = anchor_feature.astype(matmul_dtype)
        contrast_feature = contrast_feature.astype(matmul_dtype)
    itemsize = jnp.dtype(anchor_feature.dtype).itemsize

    # lane-dense feature dim (zero columns do not change dot products)
    d_pad = _round_up(feat_dim, 128)

    # VMEM limit straight from this generation's capacity minus headroom
    # (112 MiB on v5e/v6e, 48 MiB on v7x); the tile chooser uses 85% of the
    # same number, so the chosen working set always fits the compiler limit.
    cap = _vmem_capacity_bytes()
    vmem_limit = int(max(32 * _MIB, cap - 16 * _MIB))
    ta, tn = _choose_tiles(a_rows, n_total, d_pad, itemsize,
                           int(vmem_limit * 0.85))

    a_pad = _round_up(a_rows, ta)
    n_pad = _round_up(n_total, tn)
    na, nk = a_pad // ta, n_pad // tn

    anchor_feature = jnp.pad(anchor_feature,
                             ((0, a_pad - a_rows), (0, d_pad - feat_dim)))
    contrast_feature = jnp.pad(contrast_feature,
                               ((0, n_pad - n_total), (0, d_pad - feat_dim)))
    # Padded rows/columns are excluded in-kernel via explicit index-validity
    # masks; the pad values below are inert.
    row_gid = jnp.pad(row_gid, (0, a_pad - a_rows), constant_values=-1)
    col_gid = jnp.pad(col_gid, (0, n_pad - n_total), constant_values=-2)
    row_gid_2d = row_gid.reshape(a_pad, 1).astype(jnp.int32)
    col_gid_2d = col_gid.reshape(1, n_pad).astype(jnp.int32)

    kernel = functools.partial(
        _supcon_kernel,
        inv_temp=1.0 / float(temperature),
        loss_scale=-(float(temperature) / float(base_temperature)),
        num_valid_anchors=a_rows,
        num_valid_cols=n_total)

    # Single-buffer the contrast tile when its index map is grid-invariant
    # (single N tile): the second pipeline buffer would be pure VMEM waste.
    contrast_index_map = lambda i, k: (k, 0)
    if nk == 1:
        contrast_spec = pl.BlockSpec((tn, d_pad), contrast_index_map,
                                     pipeline_mode=pl.Buffered(1))
    else:
        contrast_spec = pl.BlockSpec((tn, d_pad), contrast_index_map)

    per_anchor = pl.pallas_call(
        kernel,
        out_shape=jax.ShapeDtypeStruct((a_pad, 1), jnp.float32),
        grid_spec=pltpu.PrefetchScalarGridSpec(
            num_scalar_prefetch=0,
            grid=(na, nk),
            in_specs=[
                pl.BlockSpec((ta, d_pad), lambda i, k: (i, 0)),   # anchor tile
                contrast_spec,                                    # contrast tile
                pl.BlockSpec((ta, 1), lambda i, k: (i, 0)),       # row group ids
                pl.BlockSpec((1, tn), lambda i, k: (0, k)),       # col group ids
            ],
            out_specs=pl.BlockSpec((ta, 1), lambda i, k: (i, 0)),
            scratch_shapes=[pltpu.VMEM((ta, 1), jnp.float32)] * 4,  # m, s, psum, pcnt
        ),
        compiler_params=pltpu.CompilerParams(
            dimension_semantics=("parallel", "arbitrary"),
            vmem_limit_bytes=vmem_limit),
        cost_estimate=pl.CostEstimate(
            flops=2 * a_pad * n_pad * d_pad,
            transcendentals=a_pad * n_pad + 2 * a_pad,
            bytes_accessed=(a_pad * d_pad * itemsize
                            + na * n_pad * d_pad * itemsize
                            + (a_pad + n_pad) * 4 + a_pad * 4)),
    )(anchor_feature, contrast_feature, row_gid_2d, col_gid_2d)

    # loss.view(anchor_count, batch_size).mean() == mean over all real anchors
    # (padded rows were written as exact zeros inside the kernel).
    return jnp.sum(per_anchor) / a_rows


def _supcon_loss_ref(features, labels=None, *, temperature=0.07,
                     contrast_mode='all', base_temperature=0.07):
    """Pure-JAX reference (mirrors the PyTorch code) for correctness check."""
    bsz, n_views = features.shape[0], features.shape[1]
    if labels is None:
        mask = jnp.eye(bsz, dtype=jnp.float32)
    else:
        labels = labels.reshape(-1, 1)
        mask = (labels == labels.T).astype(jnp.float32)
    cf = jnp.concatenate([features[:, v] for v in range(n_views)], axis=0)
    if contrast_mode == 'one':
        af = features[:, 0]
        anchor_count = 1
    else:
        af = cf
        anchor_count = n_views
    n_total = bsz * n_views
    a_rows = bsz * anchor_count
    logits = (af @ cf.T) / temperature
    logits = logits - jnp.max(logits, axis=1, keepdims=True)
    mask = jnp.tile(mask, (anchor_count, n_views))
    logits_mask = 1.0 - jnp.eye(a_rows, n_total, dtype=jnp.float32)
    mask = mask * logits_mask
    exp_logits = jnp.exp(logits) * logits_mask
    log_prob = logits - jnp.log(jnp.sum(exp_logits, axis=1, keepdims=True))
    mean_log_prob_pos = jnp.sum(mask * log_prob, axis=1) / jnp.sum(mask, axis=1)
    loss = -(temperature / base_temperature) * mean_log_prob_pos
    return jnp.mean(loss)


if __name__ == "__main__":
    key = jax.random.PRNGKey(0)
    k_feat, k_lab = jax.random.split(key)

    bsz, n_views, feat_dim = 8, 2, 32
    # SupConLoss normally receives L2-normalized projection-head outputs.
    feats = jax.random.normal(k_feat, (bsz, n_views, feat_dim), dtype=jnp.float32)
    feats = feats / jnp.linalg.norm(feats, axis=-1, keepdims=True)
    labels = jax.random.randint(k_lab, (bsz,), 0, 3, dtype=jnp.int32)

    # supervised, contrast_mode='all'
    loss = jax.block_until_ready(supcon_loss(feats, labels=labels))
    ref = _supcon_loss_ref(feats, labels=labels)
    assert jnp.isfinite(loss), loss
    assert jnp.allclose(loss, ref, atol=3e-4, rtol=3e-4), (loss, ref)

    # unsupervised SimCLR path (labels=None -> eye mask)
    loss_u = jax.block_until_ready(supcon_loss(feats))
    ref_u = _supcon_loss_ref(feats, labels=None)
    assert jnp.allclose(loss_u, ref_u, atol=3e-4, rtol=3e-4), (loss_u, ref_u)

    # contrast_mode='one'
    loss_one = jax.block_until_ready(
        supcon_loss(feats, labels=labels, contrast_mode='one'))
    ref_one = _supcon_loss_ref(feats, labels=labels, contrast_mode='one')
    assert jnp.allclose(loss_one, ref_one, atol=3e-4, rtol=3e-4), (loss_one, ref_one)

    # optional bf16-MXU path (f32 accumulation); looser tolerance from input rounding
    loss_bf16 = jax.block_until_ready(
        supcon_loss(feats, labels=labels, matmul_dtype=jnp.bfloat16))
    assert jnp.isfinite(loss_bf16), loss_bf16
    assert jnp.allclose(loss_bf16, ref, atol=0.2, rtol=0.1), (loss_bf16, ref)

    print("KERNEL_OK")
</pallas_src>

<mosaic_0001>
module attributes {stable_mosaic.version = 11 : i64} {
  func.func @_supcon_kernel(%arg0: i32, %arg1: i32, %arg2: memref<16x128xf32, #tpu.memory_space<vmem>>, %arg3: memref<128x128xf32, #tpu.memory_space<vmem>>, %arg4: memref<16x1xi32, #tpu.memory_space<vmem>>, %arg5: memref<1x128xi32, #tpu.memory_space<vmem>>, %arg6: memref<16x1xf32, #tpu.memory_space<vmem>>, %arg7: memref<16x1xf32, #tpu.memory_space<vmem>>, %arg8: memref<16x1xf32, #tpu.memory_space<vmem>>, %arg9: memref<16x1xf32, #tpu.memory_space<vmem>>, %arg10: memref<16x1xf32, #tpu.memory_space<vmem>>) attributes {dimension_semantics = [#tpu.dimension_semantics<parallel>, #tpu.dimension_semantics<arbitrary>], iteration_bounds = array<i64: 1, 1>, scalar_prefetch = 0 : i64, scratch_operands = 4 : i64, tpu.core_type = #tpu.core_type<tc>, window_params = [{transform_indices = @transform_0, window_bounds = array<i64: 16, 128>}, {pipeline_mode = #tpu.pipeline_mode<synchronous>, transform_indices = @transform_1, window_bounds = array<i64: 128, 128>}, {transform_indices = @transform_2, window_bounds = array<i64: 16, 1>}, {transform_indices = @transform_3, window_bounds = array<i64: 1, 128>}, {transform_indices = @transform_4, window_bounds = array<i64: 16, 1>}]} {
    %c0_i32 = arith.constant 0 : i32
    %0 = arith.cmpi eq, %arg1, %c0_i32 : i32
    %1 = arith.extui %0 : i1 to i32
    %c0_i32_0 = arith.constant 0 : i32
    %2 = arith.cmpi ne, %1, %c0_i32_0 : i32
    scf.if %2 {
      %cst_37 = arith.constant -1.000000e+30 : f32
      %64 = vector.broadcast %cst_37 : f32 to vector<16x1xf32>
      %c0_38 = arith.constant 0 : index
      %c0_39 = arith.constant 0 : index
      %65 = vector.load %arg7[%c0_38, %c0_39] : memref<16x1xf32, #tpu.memory_space<vmem>>, vector<16x1xf32>
      tpu.vector_store %arg7[%c0_38, %c0_39], %64 {strides = array<i32>} : memref<16x1xf32, #tpu.memory_space<vmem>>, vector<16x1xf32>,
      %cst_40 = arith.constant 0.000000e+00 : f32
      %66 = vector.broadcast %cst_40 : f32 to vector<16x1xf32>
      %c0_41 = arith.constant 0 : index
      %c0_42 = arith.constant 0 : index
      %67 = vector.load %arg8[%c0_41, %c0_42] : memref<16x1xf32, #tpu.memory_space<vmem>>, vector<16x1xf32>
      tpu.vector_store %arg8[%c0_41, %c0_42], %66 {strides = array<i32>} : memref<16x1xf32, #tpu.memory_space<vmem>>, vector<16x1xf32>,
      %cst_43 = arith.constant 0.000000e+00 : f32
      %68 = vector.broadcast %cst_43 : f32 to vector<16x1xf32>
      %c0_44 = arith.constant 0 : index
      %c0_45 = arith.constant 0 : index
      %69 = vector.load %arg9[%c0_44, %c0_45] : memref<16x1xf32, #tpu.memory_space<vmem>>, vector<16x1xf32>
      tpu.vector_store %arg9[%c0_44, %c0_45], %68 {strides = array<i32>} : memref<16x1xf32, #tpu.memory_space<vmem>>, vector<16x1xf32>,
      %cst_46 = arith.constant 0.000000e+00 : f32
      %70 = vector.broadcast %cst_46 : f32 to vector<16x1xf32>
      %c0_47 = arith.constant 0 : index
      %c0_48 = arith.constant 0 : index
      %71 = vector.load %arg10[%c0_47, %c0_48] : memref<16x1xf32, #tpu.memory_space<vmem>>, vector<16x1xf32>
      tpu.vector_store %arg10[%c0_47, %c0_48], %70 {strides = array<i32>} : memref<16x1xf32, #tpu.memory_space<vmem>>, vector<16x1xf32>,
    } else {
    }
    %c0 = arith.constant 0 : index
    %c0_1 = arith.constant 0 : index
    %3 = vector.load %arg2[%c0, %c0_1] : memref<16x128xf32, #tpu.memory_space<vmem>>, vector<16x128xf32>
    %cst = arith.constant 14.2857141 : f32
    %4 = vector.broadcast %cst : f32 to vector<16x128xf32>
    %5 = arith.mulf %3, %4 : vector<16x128xf32>
    %c0_2 = arith.constant 0 : index
    %c0_3 = arith.constant 0 : index
    %6 = vector.load %arg3[%c0_2, %c0_3] : memref<128x128xf32, #tpu.memory_space<vmem>>, vector<128x128xf32>
    %cst_4 = arith.constant dense<0.000000e+00> : vector<16x128xf32>
    %7 = tpu.matmul %5, %6, %cst_4 {dimension_numbers = #tpu.dot_dimension_numbers<[1], [1], [0], [0], [0, 0, 1, 0], [], []>} : vector<16x128xf32>, vector<128x128xf32>, vector<16x128xf32> -> vector<16x128xf32>
    %c16_i32 = arith.constant 16 : i32
    %8 = arith.muli %arg0, %c16_i32 : i32
    %9 = tpu.iota {dimensions = array<i32: 0>} : vector<16x128xi32>
    %10 = vector.broadcast %8 : i32 to vector<16x128xi32>
    %11 = arith.addi %10, %9 : vector<16x128xi32>
    %c128_i32 = arith.constant 128 : i32
    %12 = arith.muli %arg1, %c128_i32 : i32
    %13 = tpu.iota {dimensions = array<i32: 1>} : vector<16x128xi32>
    %14 = vector.broadcast %12 : i32 to vector<16x128xi32>
    %15 = arith.addi %14, %13 : vector<16x128xi32>
    %c16_i32_5 = arith.constant 16 : i32
    %16 = vector.broadcast %c16_i32_5 : i32 to vector<16x128xi32>
    %17 = arith.cmpi slt, %15, %16 : vector<16x128xi32>
    %18 = arith.cmpi ne, %11, %15 : vector<16x128xi32>
    %19 = arith.andi %17, %18 : vector<16x128xi1>
    %cst_6 = arith.constant -1.000000e+30 : f32
    %20 = vector.broadcast %cst_6 : f32 to vector<16x128xf32>
    %21 = arith.select %19, %7, %20 : vector<16x128xi1>, vector<16x128xf32>
    %c0_7 = arith.constant 0 : index
    %c0_8 = arith.constant 0 : index
    %22 = vector.load %arg7[%c0_7, %c0_8] : memref<16x1xf32, #tpu.memory_space<vmem>>, vector<16x1xf32>
    %cst_9 = arith.constant dense<0xFF800000> : vector<16xf32>
    %23 = vector.multi_reduction <maximumf>, %21, %cst_9 [1] : vector<16x128xf32> to vector<16xf32>
    %24 = vector.shape_cast %23 : vector<16xf32> to vector<16x1xf32>
    %25 = arith.maximumf %22, %24 : vector<16x1xf32>
    %26 = vector.broadcast %25 : vector<16x1xf32> to vector<16x128xf32>
    %27 = arith.subf %21, %26 : vector<16x128xf32>
    %28 = math.exp %27 : vector<16x128xf32>
    %cst_10 = arith.constant 0.000000e+00 : f32
    %29 = vector.broadcast %cst_10 : f32 to vector<16x128xf32>
    %30 = arith.select %19, %28, %29 : vector<16x128xi1>, vector<16x128xf32>
    %c0_11 = arith.constant 0 : index
    %c0_12 = arith.constant 0 : index
    %31 = vector.load %arg8[%c0_11, %c0_12] : memref<16x1xf32, #tpu.memory_space<vmem>>, vector<16x1xf32>
    %c0_13 = arith.constant 0 : index
    %c0_14 = arith.constant 0 : index
    %32 = vector.load %arg7[%c0_13, %c0_14] : memref<16x1xf32, #tpu.memory_space<vmem>>, vector<16x1xf32>
    %33 = arith.subf %32, %25 : vector<16x1xf32>
    %34 = math.exp %33 : vector<16x1xf32>
    %35 = arith.mulf %31, %34 : vector<16x1xf32>
    %cst_15 = arith.constant dense<0.000000e+00> : vector<16xf32>
    %36 = vector.multi_reduction <add>, %30, %cst_15 [1] : vector<16x128xf32> to vector<16xf32>
    %37 = vector.shape_cast %36 : vector<16xf32> to vector<16x1xf32>
    %38 = arith.addf %35, %37 : vector<16x1xf32>
    %c0_16 = arith.constant 0 : index
    %c0_17 = arith.constant 0 : index
    %39 = vector.load %arg8[%c0_16, %c0_17] : memref<16x1xf32, #tpu.memory_space<vmem>>, vector<16x1xf32>
    tpu.vector_store %arg8[%c0_16, %c0_17], %38 {strides = array<i32>} : memref<16x1xf32, #tpu.memory_space<vmem>>, vector<16x1xf32>,
    %c0_18 = arith.constant 0 : index
    %c0_19 = arith.constant 0 : index
    %40 = vector.load %arg7[%c0_18, %c0_19] : memref<16x1xf32, #tpu.memory_space<vmem>>, vector<16x1xf32>
    tpu.vector_store %arg7[%c0_18, %c0_19], %25 {strides = array<i32>} : memref<16x1xf32, #tpu.memory_space<vmem>>, vector<16x1xf32>,
    %c0_20 = arith.constant 0 : index
    %c0_21 = arith.constant 0 : index
    %41 = vector.load %arg4[%c0_20, %c0_21] : memref<16x1xi32, #tpu.memory_space<vmem>>, vector<16x1xi32>
    %c0_22 = arith.constant 0 : index
    %c0_23 = arith.constant 0 : index
    %42 = vector.load %arg5[%c0_22, %c0_23] : memref<1x128xi32, #tpu.memory_space<vmem>>, vector<1x128xi32>
    %43 = vector.broadcast %41 : vector<16x1xi32> to vector<16x128xi32>
    %44 = vector.broadcast %42 : vector<1x128xi32> to vector<16x128xi32>
    %45 = arith.cmpi eq, %43, %44 : vector<16x128xi32>
    %46 = arith.andi %45, %19 : vector<16x128xi1>
    %c0_24 = arith.constant 0 : index
    %c0_25 = arith.constant 0 : index
    %47 = vector.load %arg9[%c0_24, %c0_25] : memref<16x1xf32, #tpu.memory_space<vmem>>, vector<16x1xf32>
    %cst_26 = arith.constant 0.000000e+00 : f32
    %48 = vector.broadcast %cst_26 : f32 to vector<16x128xf32>
    %49 = arith.select %46, %7, %48 : vector<16x128xi1>, vector<16x128xf32>
    %cst_27 = arith.constant dense<0.000000e+00> : vector<16xf32>
    %50 = vector.multi_reduction <add>, %49, %cst_27 [1] : vector<16x128xf32> to vector<16xf32>
    %51 = vector.shape_cast %50 : vector<16xf32> to vector<16x1xf32>
    %52 = arith.addf %47, %51 : vector<16x1xf32>
    %c0_28 = arith.constant 0 : index
    %c0_29 = arith.constant 0 : index
    %53 = vector.load %arg9[%c0_28, %c0_29] : memref<16x1xf32, #tpu.memory_space<vmem>>, vector<16x1xf32>
    tpu.vector_store %arg9[%c0_28, %c0_29], %52 {strides = array<i32>} : memref<16x1xf32, #tpu.memory_space<vmem>>, vector<16x1xf32>,
    %c0_30 = arith.constant 0 : index
    %c0_31 = arith.constant 0 : index
    %54 = vector.load %arg10[%c0_30, %c0_31] : memref<16x1xf32, #tpu.memory_space<vmem>>, vector<16x1xf32>
    %55 = arith.extui %46 : vector<16x128xi1> to vector<16x128xi32>
    %56 = arith.sitofp %55 : vector<16x128xi32> to vector<16x128xf32>
    %cst_32 = arith.constant dense<0.000000e+00> : vector<16xf32>
    %57 = vector.multi_reduction <add>, %56, %cst_32 [1] : vector<16x128xf32> to vector<16xf32>
    %58 = vector.shape_cast %57 : vector<16xf32> to vector<16x1xf32>
    %59 = arith.addf %54, %58 : vector<16x1xf32>
    %c0_33 = arith.constant 0 : index
    %c0_34 = arith.constant 0 : index
    %60 = vector.load %arg10[%c0_33, %c0_34] : memref<16x1xf32, #tpu.memory_space<vmem>>, vector<16x1xf32>
    tpu.vector_store %arg10[%c0_33, %c0_34], %59 {strides = array<i32>} : memref<16x1xf32, #tpu.memory_space<vmem>>, vector<16x1xf32>,
    %c0_i32_35 = arith.constant 0 : i32
    %61 = arith.cmpi eq, %arg1, %c0_i32_35 : i32
    %62 = arith.extui %61 : i1 to i32
    %c0_i32_36 = arith.constant 0 : i32
    %63 = arith.cmpi ne, %62, %c0_i32_36 : i32
    scf.if %63 {
      %c0_37 = arith.constant 0 : index
      %c0_38 = arith.constant 0 : index
      %64 = vector.load %arg7[%c0_37, %c0_38] : memref<16x1xf32, #tpu.memory_space<vmem>>, vector<16x1xf32>
      %c0_39 = arith.constant 0 : index
      %c0_40 = arith.constant 0 : index
      %65 = vector.load %arg8[%c0_39, %c0_40] : memref<16x1xf32, #tpu.memory_space<vmem>>, vector<16x1xf32>
      %66 = math.log %65 : vector<16x1xf32>
      %67 = arith.addf %64, %66 : vector<16x1xf32>
      %c0_41 = arith.constant 0 : index
      %c0_42 = arith.constant 0 : index
      %68 = vector.load %arg9[%c0_41, %c0_42] : memref<16x1xf32, #tpu.memory_space<vmem>>, vector<16x1xf32>
      %c0_43 = arith.constant 0 : index
      %c0_44 = arith.constant 0 : index
      %69 = vector.load %arg10[%c0_43, %c0_44] : memref<16x1xf32, #tpu.memory_space<vmem>>, vector<16x1xf32>
      %70 = arith.divf %68, %69 : vector<16x1xf32>
      %71 = arith.subf %70, %67 : vector<16x1xf32>
      %cst_45 = arith.constant -1.000000e+00 : f32
      %72 = vector.broadcast %cst_45 : f32 to vector<16x1xf32>
      %73 = arith.mulf %72, %71 : vector<16x1xf32>
      %74 = tpu.iota {dimensions = array<i32: 0>} : vector<16x1xi32>
      %75 = vector.broadcast %8 : i32 to vector<16x1xi32>
      %76 = arith.addi %75, %74 : vector<16x1xi32>
      %c16_i32_46 = arith.constant 16 : i32
      %77 = vector.broadcast %c16_i32_46 : i32 to vector<16x1xi32>
      %78 = arith.cmpi slt, %76, %77 : vector<16x1xi32>
      %cst_47 = arith.constant 0.000000e+00 : f32
      %79 = vector.broadcast %cst_47 : f32 to vector<16x1xf32>
      %80 = arith.select %78, %73, %79 : vector<16x1xi1>, vector<16x1xf32>
      %c0_48 = arith.constant 0 : index
      %c0_49 = arith.constant 0 : index
      %81 = vector.load %arg6[%c0_48, %c0_49] : memref<16x1xf32, #tpu.memory_space<vmem>>, vector<16x1xf32>
      tpu.vector_store %arg6[%c0_48, %c0_49], %80 {strides = array<i32>} : memref<16x1xf32, #tpu.memory_space<vmem>>, vector<16x1xf32>,
    } else {
    }
    return
  }
  func.func @transform_0(%arg0: i32, %arg1: i32) -> (i32, i32) {
    %c0_i32 = arith.constant 0 : i32
    %c0_i32_0 = arith.constant 0 : i32
    return %arg0, %c0_i32 : i32, i32
  }
  func.func @transform_1(%arg0: i32, %arg1: i32) -> (i32, i32) {
    %c0_i32 = arith.constant 0 : i32
    %c0_i32_0 = arith.constant 0 : i32
    return %arg1, %c0_i32 : i32, i32
  }
  func.func @transform_2(%arg0: i32, %arg1: i32) -> (i32, i32) {
    %c0_i32 = arith.constant 0 : i32
    %c0_i32_0 = arith.constant 0 : i32
    return %arg0, %c0_i32 : i32, i32
  }
  func.func @transform_3(%arg0: i32, %arg1: i32) -> (i32, i32) {
    %c0_i32 = arith.constant 0 : i32
    %c0_i32_0 = arith.constant 0 : i32
    return %c0_i32, %arg1 : i32, i32
  }
  func.func @transform_4(%arg0: i32, %arg1: i32) -> (i32, i32) {
    %c0_i32 = arith.constant 0 : i32
    %c0_i32_0 = arith.constant 0 : i32
    return %arg0, %c0_i32 : i32, i32
  }
}

</mosaic_0001>

<llo_original>
// kernel: tpu_custom_call.1
$region0: #{tpu_custom_call.1}
  #allocation0 [shape = 'u32[]', space=smem, size = 0x4, offset = 0x4, fixed_abs, tag = 'smem constant byte address 0x4 - core index']
  #allocation1 [shape = 'u32[144,128]{1,0:T(1,128)}', space=vmem, size = 0x12000, scoped, tag = 'internal scratch']
  #allocation2 [shape = 'f32[16,1]{1,0:T(8,128)}', space=vmem, size = 0x2000, scoped, tag = 'scratch operand']
  #allocation3 [shape = 'f32[16,1]{1,0:T(8,128)}', space=vmem, size = 0x2000, scoped, tag = 'scratch operand']
  #allocation4 [shape = 'f32[16,1]{1,0:T(8,128)}', space=vmem, size = 0x2000, scoped, tag = 'scratch operand']
  #allocation5 [shape = 'f32[16,1]{1,0:T(8,128)}', space=vmem, size = 0x2000, scoped, tag = 'scratch operand']
  %s0 = inlined_call_operand.vmem [shape: f32[16,128], index: 0, kind: input, shape index: {}]
  %s1 = inlined_call_operand.hbm [shape: f32[128,128], index: 1, kind: input, shape index: {}]
  %s2 = inlined_call_operand.vmem [shape: s32[16,1], index: 2, kind: input, shape index: {}]
  %s3 = inlined_call_operand.vmem [shape: s32[1,128], index: 3, kind: input, shape index: {}]
  %s4 = inlined_call_operand.vmem [shape: f32[16,1], index: 4, kind: output, shape index: {}]
  %s5 = sld [smem:[#allocation0]]
  $region38: #{tpu_custom_call.1} parent=0
    _
  %s7 = ssub.s32 1, %s5
  %s8 = scalar_select 0, %s7, %s5
  $region1: #{tpu_custom_call.1} parent=0
    #allocation6 [shape = 'u8[65536]{0}', space=vmem, size = 0x10000, scoped, tag = 'input window, operand 1, single buffered']
    #allocation7 [shape = 's32[1]{0}', space=sflag, size = 0x4, scoped, tag = 'scoped memory for tpu_custom_call.1']
    %9 = vsyncpa [#allocation7], 0
    // Predicated region
    $region2: #{tpu_custom_call.1} parent=1 // pred_check
      _
    $region3: #{tpu_custom_call.1} parent=1 // pred_check_branch
      %11 = sbr.rel (0) target = $region5
    $region4: #{tpu_custom_call.1} parent=1 // pred_region
      _
    $region5: #{tpu_custom_call.1} parent=1 // pred_fallthru
      _
    // Predicated region
    $region6: #{tpu_custom_call.1} parent=1 // pred_check
      _
    $region7: #{tpu_custom_call.1} parent=1 // pred_check_branch
      %13 = sbr.rel (0) target = $region9
    $region8: #{tpu_custom_call.1} parent=1 // pred_region
      %s15 = ssub.s32 2048, 2048
      %16 = vsyncadd [#allocation7], %s15
      %s17 = sshll.u32 [#allocation6], 4
      %s18 = int_to_ptr.vmem [resolvable:$true] %s17
      %23 = dma.hbm_to_vmem [thread:$0]  %s1, 2048, %s18, [#allocation7], 128, 128, 8
    $region9: #{tpu_custom_call.1} parent=1 // pred_fallthru
      _
    // Predicated region
    $region10: #{tpu_custom_call.1} parent=1 // pred_check
      _
    $region11: #{tpu_custom_call.1} parent=1 // pred_check_branch
      %25 = sbr.rel (0) target = $region13
    $region12: #{tpu_custom_call.1} parent=1 // pred_region
      _
    $region13: #{tpu_custom_call.1} parent=1 // pred_fallthru
      _
    // Predicated region
    $region14: #{tpu_custom_call.1} parent=1 // pred_check
      _
    $region15: #{tpu_custom_call.1} parent=1 // pred_check_branch
      %27 = sbr.rel (0) target = $region17
    $region16: #{tpu_custom_call.1} parent=1 // pred_region
      _
    $region17: #{tpu_custom_call.1} parent=1 // pred_fallthru
      _
    // Predicated region
    $region18: #{tpu_custom_call.1} parent=1 // pred_check
      _
    $region19: #{tpu_custom_call.1} parent=1 // pred_check_branch
      %29 = sbr.rel (0) target = $region21
    $region20: #{tpu_custom_call.1} parent=1 // pred_region
      %30 = dma.done [#allocation7], 2048
    $region21: #{tpu_custom_call.1} parent=1 // pred_fallthru
      _
    %p31 = scmp.eq.s32.totalorder 0, 0
    // Predicated region
    $region22: #{tpu_custom_call.1} parent=1 // pred_check
      %p32 = pneg %p31
    $region23: #{tpu_custom_call.1} parent=1 // pred_check_branch
      %34 = sbr.rel (%p32) target = $region25
    $region24: #{tpu_custom_call.1} parent=1 // pred_region
      %vm35 = vcmask 7168
      %36 = vst.msk [vmem:[#allocation2] sm:$0xff] %vm35, -1e+30
      %37 = vst.msk [vmem:[#allocation2 + $0x8] sm:$0xff] %vm35, -1e+30
      %38 = vst.msk [vmem:[#allocation3] sm:$0xff] %vm35, 0.0
      %39 = vst.msk [vmem:[#allocation3 + $0x8] sm:$0xff] %vm35, 0.0
      %40 = vst.msk [vmem:[#allocation4] sm:$0xff] %vm35, 0.0
      %41 = vst.msk [vmem:[#allocation4 + $0x8] sm:$0xff] %vm35, 0.0
      %42 = vst.msk [vmem:[#allocation5] sm:$0xff] %vm35, 0.0
      %43 = vst.msk [vmem:[#allocation5 + $0x8] sm:$0xff] %vm35, 0.0
    $region25: #{tpu_custom_call.1} parent=1 // pred_fallthru
      _
    %v44 = vld [vmem:[%s0] sm:$0xff]
    %v45 = vld [vmem:[%s0 + $0x8] sm:$0xff]
    %v46 = vmul.f32 %v44, 14.285714
    %v47 = vmul.f32 %v45, 14.285714
    %v48 = vld [vmem:[#allocation6] sm:$0xff]
    %v49 = vld [vmem:[#allocation6 + $0x8] sm:$0xff]
    %v50 = vld [vmem:[#allocation6 + $0x10] sm:$0xff]
    %v51 = vld [vmem:[#allocation6 + $0x18] sm:$0xff]
    %v52 = vld [vmem:[#allocation6 + $0x20] sm:$0xff]
    %v53 = vld [vmem:[#allocation6 + $0x28] sm:$0xff]
    %v54 = vld [vmem:[#allocation6 + $0x30] sm:$0xff]
    %v55 = vld [vmem:[#allocation6 + $0x38] sm:$0xff]
    %v56 = vld [vmem:[#allocation6 + $0x40] sm:$0xff]
    %v57 = vld [vmem:[#allocation6 + $0x48] sm:$0xff]
    %v58 = vld [vmem:[#allocation6 + $0x50] sm:$0xff]
    %v59 = vld [vmem:[#allocation6 + $0x58] sm:$0xff]
    %v60 = vld [vmem:[#allocation6 + $0x60] sm:$0xff]
    %v61 = vld [vmem:[#allocation6 + $0x68] sm:$0xff]
    %v62 = vld [vmem:[#allocation6 + $0x70] sm:$0xff]
    %v63 = vld [vmem:[#allocation6 + $0x78] sm:$0xff]
    %64 = vmatprep.subr.mxu0 0.0
    %65 = vmatpush1.xpose.msra.mxu0 %v48
    %66 = vmatprep.subr.mxu0 0.0
    %67 = vmatpush1.xpose.msra.mxu0 %v49
    %68 = vmatprep.subr.mxu0 0.0
    %69 = vmatpush1.xpose.msra.mxu0 %v50
    %70 = vmatprep.subr.mxu0 0.0
    %71 = vmatpush1.xpose.msra.mxu0 %v51
    %72 = vmatprep.subr.mxu0 0.0
    %73 = vmatpush1.xpose.msra.mxu0 %v52
    %74 = vmatprep.subr.mxu0 0.0
    %75 = vmatpush1.xpose.msra.mxu0 %v53
    %76 = vmatprep.subr.mxu0 0.0
    %77 = vmatpush1.xpose.msra.mxu0 %v54
    %78 = vmatprep.subr.mxu0 0.0
    %79 = vmatpush1.xpose.msra.mxu0 %v55
    %80 = vmatprep.subr.mxu0 0.0
    %81 = vmatpush1.xpose.msra.mxu0 %v56
    %82 = vmatprep.subr.mxu0 0.0
    %83 = vmatpush1.xpose.msra.mxu0 %v57
    %84 = vmatprep.subr.mxu0 0.0
    %85 = vmatpush1.xpose.msra.mxu0 %v58
    %86 = vmatprep.subr.mxu0 0.0
    %87 = vmatpush1.xpose.msra.mxu0 %v59
    %88 = vmatprep.subr.mxu0 0.0
    %89 = vmatpush1.xpose.msra.mxu0 %v60
    %90 = vmatprep.subr.mxu0 0.0
    %91 = vmatpush1.xpose.msra.mxu0 %v61
    %92 = vmatprep.subr.mxu0 0.0
    %93 = vmatpush1.xpose.msra.mxu0 %v62
    %94 = vmatprep.subr.mxu0 0.0
    %95 = vmatpush1.xpose.msra.mxu0 %v63
    %96 = vmatprep.subr.mxu0 0.0
    %97 = vmatpush1.xpose.msra.mxu0 0.0
    %98 = vmatprep.subr.mxu0 0.0
    %99 = vmatpush1.xpose.msra.mxu0 0.0
    %100 = vmatprep.subr.mxu0 0.0
    %101 = vmatpush1.xpose.msra.mxu0 0.0
    %102 = vmatprep.subr.mxu0 0.0
    %103 = vmatpush1.xpose.msra.mxu0 0.0
    %104 = vmatprep.subr.mxu0 0.0
    %105 = vmatpush1.xpose.msra.mxu0 0.0
    %106 = vmatprep.subr.mxu0 0.0
    %107 = vmatpush1.xpose.msra.mxu0 0.0
    %108 = vmatprep.subr.mxu0 0.0
    %109 = vmatpush1.xpose.msra.mxu0 0.0
    %110 = vmatprep.subr.mxu0 0.0
    %111 = vmatpush1.xpose.msra.mxu0 0.0
    %112 = vmatprep.subr.mxu0 0.0
    %113 = vmatpush1.xpose.msra.mxu0 0.0
    %114 = vmatprep.subr.mxu0 0.0
    %115 = vmatpush1.xpose.msra.mxu0 0.0
    %116 = vmatprep.subr.mxu0 0.0
    %117 = vmatpush1.xpose.msra.mxu0 0.0
    %118 = vmatprep.subr.mxu0 0.0
    %119 = vmatpush1.xpose.msra.mxu0 0.0
    %120 = vmatprep.subr.mxu0 0.0
    %121 = vmatpush1.xpose.msra.mxu0 0.0
    %122 = vmatprep.subr.mxu0 0.0
    %123 = vmatpush1.xpose.msra.mxu0 0.0
    %124 = vmatprep.subr.mxu0 0.0
    %125 = vmatpush1.xpose.msra.mxu0 0.0
    %126 = vmatprep.subr.mxu0 0.0
    %127 = vmatpush1.xpose.msra.mxu0 0.0
    %128 = vmatprep.mubr.f32.mxu0 0.0
    %129 = vmatmul.mubr.f32.gmra.mrb[0].mxu0 %v46
    %v130 = vpop.f32.mrb[0].mxu0
    %v131 = vadd.f32 0.0, %v130
    %v132 = vpop.f32.mrb[0].mxu0
    %133 = vmatprep.mubr.f32.mxu0 0.0
    %134 = vmatmul.mubr.f32.gmra.mrb[0].mxu0 %v47
    %v135 = vpop.f32.mrb[0].mxu0
    %v136 = vadd.f32 0.0, %v135
    %v137 = vpop.f32.mrb[0].mxu0
    %138 = vdwg.mxu0
    %s139 = smul.u32 0, 16
    %v140 = vlaneseq
    %v141 = vshrl.u32 %v140, 7
    %v142 = vadd.s32 %v141, 8
    %v143 = vstv %s139
    %v144 = vadd.s32 %v143, %v141
    %v145 = vadd.s32 %v143, %v142
    %s146 = smul.u32 0, 128
    %v147 = vlaneseq
    %v148 = vand.u32 %v147, 127
    %v149 = vstv %s146
    %v150 = vadd.s32 %v149, %v148
    %vm151 = vcmp.lt.s32.totalorder %v150, 16
    %vm152 = vcmp.ne.s32.totalorder %v144, %v150
    %vm153 = vcmp.ne.s32.totalorder %v145, %v150
    %vm154 = vmand %vm151, %vm152
    %vm155 = vmand %vm151, %vm153
    %v156 = vsel %vm154, %v131, -1e+30
    %v157 = vsel %vm155, %v136, -1e+30
    %v158 = vld [vmem:[#allocation2] sm:$0xff]
    %v159 = vld [vmem:[#allocation2 + $0x8] sm:$0xff]
    %160 = vmax.xlane.f32.xlu0 %v156
    %v161 = vpop.xlane.xlu0 %160
    %162 = vmax.xlane.f32.xlu0 %v157
    %v163 = vpop.xlane.xlu0 %162
    %v164 = vmax.f32 %v158, %v161
    %v165 = vmax.f32 %v159, %v163
    %167 = vset.pattern.permute.xlu0 0
    %168 = vperm.xlu0 %167, %v164
    %v169 = vpop.permute.xlu0 %168
    %172 = vset.pattern.permute.xlu0 0
    %173 = vperm.xlu0 %172, %v165
    %v174 = vpop.permute.xlu0 %173
    %v176 = vsub.f32 %v156, %v169
    %v177 = vsub.f32 %v157, %v174
    %v178 = vmul.f32 %v176, 1.442695
    %v179 = vpow.pop %v178
    %v180 = vmul.f32 %v177, 1.442695
    %v181 = vpow.pop %v180
    %v182 = vsel %vm154, %v179, 0.0
    %v183 = vsel %vm155, %v181, 0.0
    %v184 = vld [vmem:[#allocation3] sm:$0xff]
    %v185 = vld [vmem:[#allocation3 + $0x8] sm:$0xff]
    %v186 = vsub.f32 %v158, %v164
    %v187 = vsub.f32 %v159, %v165
    %v188 = vmul.f32 %v186, 1.442695
    %v189 = vpow.pop %v188
    %v190 = vmul.f32 %v187, 1.442695
    %v191 = vpow.pop %v190
    %v192 = vmul.f32 %v184, %v189
    %v193 = vmul.f32 %v185, %v191
    %194 = vadd.xlane.f32.xlu0 %v182
    %v195 = vpop.xlane.xlu0 %194
    %196 = vadd.xlane.f32.xlu0 %v183
    %v197 = vpop.xlane.xlu0 %196
    %v198 = vadd.f32 %v192, %v195
    %v199 = vadd.f32 %v193, %v197
    %vm200 = vcmask 7168
    %201 = vst.msk [vmem:[#allocation3] sm:$0xff] %vm200, %v198
    %202 = vst.msk [vmem:[#allocation3 + $0x8] sm:$0xff] %vm200, %v199
    %203 = vst.msk [vmem:[#allocation2] sm:$0xff] %vm200, %v164
    %204 = vst.msk [vmem:[#allocation2 + $0x8] sm:$0xff] %vm200, %v165
    %v205 = vld [vmem:[%s2] sm:$0xff]
    %v206 = vld [vmem:[%s2 + $0x8] sm:$0xff]
    %v207 = vld [vmem:[%s3] sm:$0x1]
    %208 = vset.pattern.permute.xlu0 0
    %209 = vperm.xlu0 %208, %v205
    %v210 = vpop.permute.xlu0 %209
    %211 = vset.pattern.permute.xlu0 0
    %212 = vperm.xlu0 %211, %v206
    %v213 = vpop.permute.xlu0 %212
    %v214 = vlaneseq
    %v215 = vshrl.u32 %v214, 7
    %v216 = vsub.s32 0, %v215
    %v217 = vrot.slane %v207, %v216
    %vm218 = vcmp.eq.s32.totalorder %v210, %v217
    %vm219 = vcmp.eq.s32.totalorder %v213, %v217
    %vm220 = vmand %vm218, %vm154
    %vm221 = vmand %vm219, %vm155
    %v222 = vld [vmem:[#allocation4] sm:$0xff]
    %v223 = vld [vmem:[#allocation4 + $0x8] sm:$0xff]
    %v224 = vsel %vm220, %v131, 0.0
    %v225 = vsel %vm221, %v136, 0.0
    %226 = vadd.xlane.f32.xlu0 %v224
    %v227 = vpop.xlane.xlu0 %226
    %228 = vadd.xlane.f32.xlu0 %v225
    %v229 = vpop.xlane.xlu0 %228
    %v230 = vadd.f32 %v222, %v227
    %v231 = vadd.f32 %v223, %v229
    %232 = vst.msk [vmem:[#allocation4] sm:$0xff] %vm200, %v230
    %233 = vst.msk [vmem:[#allocation4 + $0x8] sm:$0xff] %vm200, %v231
    %v234 = vld [vmem:[#allocation5] sm:$0xff]
    %v235 = vld [vmem:[#allocation5 + $0x8] sm:$0xff]
    %v236 = vsel %vm220, 1, 0
    %v237 = vsel %vm221, 1, 0
    %v238 = vcvt.s32.f32 %v236
    %v239 = vcvt.s32.f32 %v237
    %240 = vadd.xlane.f32.xlu0 %v238
    %v241 = vpop.xlane.xlu0 %240
    %242 = vadd.xlane.f32.xlu0 %v239
    %v243 = vpop.xlane.xlu0 %242
    %v244 = vadd.f32 %v234, %v241
    %v245 = vadd.f32 %v235, %v243
    %246 = vst.msk [vmem:[#allocation5] sm:$0xff] %vm200, %v244
    %247 = vst.msk [vmem:[#allocation5 + $0x8] sm:$0xff] %vm200, %v245
    // Predicated region
    $region26: #{tpu_custom_call.1} parent=1 // pred_check
      %p248 = pneg %p31
    $region27: #{tpu_custom_call.1} parent=1 // pred_check_branch
      %250 = sbr.rel (%p248) target = $region29
    $region28: #{tpu_custom_call.1} parent=1 // pred_region
      %v251 = vld [vmem:[#allocation2] sm:$0xff]
      %v252 = vld [vmem:[#allocation2 + $0x8] sm:$0xff]
      %v253 = vld [vmem:[#allocation3] sm:$0xff]
      %v254 = vld [vmem:[#allocation3 + $0x8] sm:$0xff]
      %v255 = vlog2.pop %v253
      %v256 = vmul.f32 %v255, 0.6931472
      %v257 = vlog2.pop %v254
      %v258 = vmul.f32 %v257, 0.6931472
      %v259 = vadd.f32 %v251, %v256
      %v260 = vadd.f32 %v252, %v258
      %v261 = vld [vmem:[#allocation4] sm:$0xff]
      %v262 = vld [vmem:[#allocation4 + $0x8] sm:$0xff]
      %v263 = vld [vmem:[#allocation5] sm:$0xff]
      %v264 = vld [vmem:[#allocation5 + $0x8] sm:$0xff]
      %v265 = vrcp.pop %v263
      %v266 = vmul.f32 %v261, %v265
      %v267 = vrcp.pop %v264
      %v268 = vmul.f32 %v262, %v267
      %v269 = vsub.f32 %v266, %v259
      %v270 = vsub.f32 %v268, %v260
      %v271 = vmul.f32 %v269, -1.0
      %v272 = vmul.f32 %v270, -1.0
      %vm273 = vcmp.lt.s32.totalorder %v144, 16
      %vm274 = vcmp.lt.s32.totalorder %v145, 16
      %v275 = vsel %vm273, %v271, 0.0
      %v276 = vsel %vm274, %v272, 0.0
      %277 = vst.msk [vmem:[%s4] sm:$0xff] %vm200, %v275
      %278 = vst.msk [vmem:[%s4 + $0x8] sm:$0xff] %vm200, %v276
    $region29: #{tpu_custom_call.1} parent=1 // pred_fallthru
      _
    // Predicated region
    $region30: #{tpu_custom_call.1} parent=1 // pred_check
      _
    $region31: #{tpu_custom_call.1} parent=1 // pred_check_branch
      %280 = sbr.rel (0) target = $region33
    $region32: #{tpu_custom_call.1} parent=1 // pred_region
      _
    $region33: #{tpu_custom_call.1} parent=1 // pred_fallthru
      _
    // Predicated region
    $region34: #{tpu_custom_call.1} parent=1 // pred_check
      _
    $region35: #{tpu_custom_call.1} parent=1 // pred_check_branch
      %282 = sbr.rel (0) target = $region37
    $region36: #{tpu_custom_call.1} parent=1 // pred_region
      _
    $region37: #{tpu_custom_call.1} parent=1 // pred_fallthru
      _
    %283 = vsyncpa [#allocation7], 1

</llo_original>
